<compile_context>
chip_gen: v6e
topology: v6e:2x2x1
jax: 0.10.0
libtpu: 0.0.40
codegen_flags: <defaults>
</compile_context>

<pallas_src>
import jax
import jax.numpy as jnp
from jax.experimental import pallas as pl
from jax.experimental.pallas import tpu as pltpu


LANE = 128      # TPU lane width
SUBLANE = 8     # f32 sublane granule


def _round_up(x, m):
    return ((x + m - 1) // m) * m


def _mxu_batch_cap():
    """Generation-aware cap for the batch (M) tile: 128 on v5e, 256 on v6e/v7x."""
    try:
        info = pltpu.get_tpu_info()
        name = str(getattr(info, "chip_version", "")).lower()
        if ("6" in name) or ("7" in name):
            return 256
        return 128
    except Exception:
        return 128


def _pick_batch_tile(B, cap):
    """Pick the batch tile: single step when B <= cap, else minimize padding."""
    if B <= cap:
        return _round_up(B, SUBLANE)
    candidates = []
    c = cap
    while c >= SUBLANE:
        candidates.append(c)
        c //= 2
    best_tb, best_waste = candidates[0], _round_up(B, candidates[0]) - B
    for c in candidates:
        waste = _round_up(B, c) - B
        if waste < best_waste:
            best_tb, best_waste = c, waste
    return best_tb


def prepare_params(w1_t, b1, w2_t, b2):
    """Pad parameters once (outside the per-call path).

    Hidden dim is padded only to the sublane granule (8). Padded W1 columns and
    b1 entries are zero -> ReLU(0) = 0 -> padded W2 rows contribute exactly 0,
    preserving the original semantics.
    """
    in_size, hidden = w1_t.shape
    out_size = w2_t.shape[1]
    h_pad = _round_up(hidden, SUBLANE)
    if h_pad != hidden:
        w1_p = jnp.zeros((in_size, h_pad), w1_t.dtype).at[:, :hidden].set(w1_t)
        b1_p = jnp.zeros((1, h_pad), b1.dtype).at[:, :hidden].set(b1)
        w2_p = jnp.zeros((h_pad, out_size), w2_t.dtype).at[:hidden, :].set(w2_t)
    else:
        w1_p, b1_p, w2_p = w1_t, b1, w2_t
    return w1_p, b1_p, w2_p, b2


def mlp_kernel(x_ref, w1_ref, b1_ref, w2_ref, b2_ref, o_ref):
    # fc1: (tb, in) @ (in, h_pad) + (1, h_pad), f32 accumulation on the MXU.
    h = jnp.dot(x_ref[...], w1_ref[...], preferred_element_type=jnp.float32)
    h = jnp.maximum(h + b1_ref[...], 0.0)                       # bias + ReLU (VPU)
    # fc2: (tb, h_pad) @ (h_pad, out) + (1, out)
    y = jnp.dot(h.astype(w2_ref.dtype), w2_ref[...],
                preferred_element_type=jnp.float32)
    o_ref[...] = (y + b2_ref[...]).astype(o_ref.dtype)


def mlp_forward(x, params):
    """x: (B, input_size); params: output of prepare_params (already padded).

    Returns relu(x @ W1 + b1) @ W2 + b2, shape (B, output_size).
    """
    w1_p, b1_p, w2_p, b2_p = params
    B, in_size = x.shape
    h_pad = w1_p.shape[1]
    out_size = w2_p.shape[1]
    dtype = x.dtype
    itemsize = jnp.dtype(dtype).itemsize

    cap = _mxu_batch_cap()
    tb = _pick_batch_tile(B, cap)
    b_pad = _round_up(B, tb)
    nb = b_pad // tb

    # Skip the identity copy when B already fits the tile grid.
    if b_pad != B:
        x_in = jnp.zeros((b_pad, in_size), dtype).at[:B, :].set(x)
    else:
        x_in = x

    flops = 2 * b_pad * (in_size * h_pad + h_pad * out_size)
    bytes_accessed = itemsize * (
        x_in.size + w1_p.size + b1_p.size + w2_p.size + b2_p.size
        + b_pad * out_size)

    out = pl.pallas_call(
        mlp_kernel,
        out_shape=jax.ShapeDtypeStruct((b_pad, out_size), dtype),
        grid_spec=pltpu.PrefetchScalarGridSpec(
            num_scalar_prefetch=0,
            grid=(nb,),  # tiled over batch -> software-pipelined, megacore-parallel
            in_specs=[
                pl.BlockSpec((tb, in_size), lambda i: (i, 0)),      # x tile
                pl.BlockSpec((in_size, h_pad), lambda i: (0, 0)),   # W1 (resident)
                pl.BlockSpec((1, h_pad), lambda i: (0, 0)),         # b1
                pl.BlockSpec((h_pad, out_size), lambda i: (0, 0)),  # W2 (resident)
                pl.BlockSpec((1, out_size), lambda i: (0, 0)),      # b2
            ],
            # Unpadded output: last dim equals the full array dim, so this block
            # shape is legal and avoids the 8x padded write + slice copy.
            out_specs=pl.BlockSpec((tb, out_size), lambda i: (i, 0)),
        ),
        compiler_params=pltpu.CompilerParams(
            dimension_semantics=("parallel",),
        ),
        cost_estimate=pl.CostEstimate(
            flops=flops, transcendentals=0, bytes_accessed=bytes_accessed),
    )(x_in, w1_p, b1_p, w2_p, b2_p)

    if b_pad != B:
        out = out[:B, :]
    return out


def init_params(key, input_size, output_size, n_neurons=2, dtype=jnp.float32):
    # Mimic PyTorch nn.Linear default init: U(-1/sqrt(fan_in), 1/sqrt(fan_in)).
    k1, k2, k3, k4 = jax.random.split(key, 4)
    bound1 = 1.0 / jnp.sqrt(input_size)
    bound2 = 1.0 / jnp.sqrt(n_neurons)
    # Stored already transposed: (in_features, out_features)
    w1_t = jax.random.uniform(k1, (input_size, n_neurons), dtype, -bound1, bound1)
    b1 = jax.random.uniform(k2, (1, n_neurons), dtype, -bound1, bound1)
    w2_t = jax.random.uniform(k3, (n_neurons, output_size), dtype, -bound2, bound2)
    b2 = jax.random.uniform(k4, (1, output_size), dtype, -bound2, bound2)
    return w1_t, b1, w2_t, b2


if __name__ == "__main__":
    key = jax.random.PRNGKey(0)
    kx, kp = jax.random.split(key)

    batch = 8
    input_size = 32
    output_size = 16

    x = jax.random.normal(kx, (batch, input_size), dtype=jnp.float32)
    w1_t, b1, w2_t, b2 = init_params(kp, input_size, output_size)

    # Padding hoisted out of the per-call path: prepare once, reuse every forward.
    params = prepare_params(w1_t, b1, w2_t, b2)

    out = mlp_forward(x, params)
    out = jax.block_until_ready(out)

    # Reference check in plain JAX (same math as the PyTorch forward).
    ref = jnp.maximum(x @ w1_t + b1, 0.0) @ w2_t + b2
    assert out.shape == (batch, output_size)
    assert jnp.allclose(out, ref, atol=1e-5, rtol=1e-5)

    print("KERNEL_OK")
</pallas_src>

<mosaic_0001>
module attributes {stable_mosaic.version = 11 : i64} {
  func.func @mlp_kernel(%arg0: i32, %arg1: memref<8x32xf32, #tpu.memory_space<vmem>>, %arg2: memref<32x8xf32, #tpu.memory_space<vmem>>, %arg3: memref<1x8xf32, #tpu.memory_space<vmem>>, %arg4: memref<8x16xf32, #tpu.memory_space<vmem>>, %arg5: memref<1x16xf32, #tpu.memory_space<vmem>>, %arg6: memref<8x16xf32, #tpu.memory_space<vmem>>) attributes {dimension_semantics = [#tpu.dimension_semantics<parallel>], iteration_bounds = array<i64: 1>, scalar_prefetch = 0 : i64, scratch_operands = 0 : i64, tpu.core_type = #tpu.core_type<tc>, window_params = [{transform_indices = @transform_0, window_bounds = array<i64: 8, 32>}, {pipeline_mode = #tpu.pipeline_mode<synchronous>, transform_indices = @transform_1, window_bounds = array<i64: 32, 8>}, {pipeline_mode = #tpu.pipeline_mode<synchronous>, transform_indices = @transform_2, window_bounds = array<i64: 1, 8>}, {pipeline_mode = #tpu.pipeline_mode<synchronous>, transform_indices = @transform_3, window_bounds = array<i64: 8, 16>}, {pipeline_mode = #tpu.pipeline_mode<synchronous>, transform_indices = @transform_4, window_bounds = array<i64: 1, 16>}, {transform_indices = @transform_5, window_bounds = array<i64: 8, 16>}]} {
    %c0 = arith.constant 0 : index
    %c0_0 = arith.constant 0 : index
    %0 = vector.load %arg1[%c0, %c0_0] : memref<8x32xf32, #tpu.memory_space<vmem>>, vector<8x32xf32>
    %c0_1 = arith.constant 0 : index
    %c0_2 = arith.constant 0 : index
    %1 = vector.load %arg2[%c0_1, %c0_2] : memref<32x8xf32, #tpu.memory_space<vmem>>, vector<32x8xf32>
    %cst = arith.constant dense<0.000000e+00> : vector<8x8xf32>
    %2 = tpu.matmul %0, %1, %cst {dimension_numbers = #tpu.dot_dimension_numbers<[1], [0], [0], [1], [0, 0, 1, 1], [], []>} : vector<8x32xf32>, vector<32x8xf32>, vector<8x8xf32> -> vector<8x8xf32>
    %c0_3 = arith.constant 0 : index
    %c0_4 = arith.constant 0 : index
    %3 = vector.load %arg3[%c0_3, %c0_4] : memref<1x8xf32, #tpu.memory_space<vmem>>, vector<1x8xf32>
    %4 = vector.broadcast %3 : vector<1x8xf32> to vector<8x8xf32>
    %5 = arith.addf %2, %4 : vector<8x8xf32>
    %cst_5 = arith.constant 0.000000e+00 : f32
    %6 = vector.broadcast %cst_5 : f32 to vector<8x8xf32>
    %7 = arith.maximumf %5, %6 : vector<8x8xf32>
    %c0_6 = arith.constant 0 : index
    %c0_7 = arith.constant 0 : index
    %8 = vector.load %arg4[%c0_6, %c0_7] : memref<8x16xf32, #tpu.memory_space<vmem>>, vector<8x16xf32>
    %cst_8 = arith.constant dense<0.000000e+00> : vector<8x16xf32>
    %9 = tpu.matmul %7, %8, %cst_8 {dimension_numbers = #tpu.dot_dimension_numbers<[1], [0], [0], [1], [0, 0, 1, 1], [], []>} : vector<8x8xf32>, vector<8x16xf32>, vector<8x16xf32> -> vector<8x16xf32>
    %c0_9 = arith.constant 0 : index
    %c0_10 = arith.constant 0 : index
    %10 = vector.load %arg5[%c0_9, %c0_10] : memref<1x16xf32, #tpu.memory_space<vmem>>, vector<1x16xf32>
    %11 = vector.broadcast %10 : vector<1x16xf32> to vector<8x16xf32>
    %12 = arith.addf %9, %11 : vector<8x16xf32>
    %c0_11 = arith.constant 0 : index
    %c0_12 = arith.constant 0 : index
    %13 = vector.load %arg6[%c0_11, %c0_12] : memref<8x16xf32, #tpu.memory_space<vmem>>, vector<8x16xf32>
    tpu.vector_store %arg6[%c0_11, %c0_12], %12 {strides = array<i32>} : memref<8x16xf32, #tpu.memory_space<vmem>>, vector<8x16xf32>,
    return
  }
  func.func @transform_0(%arg0: i32) -> (i32, i32) {
    %c0_i32 = arith.constant 0 : i32
    %c0_i32_0 = arith.constant 0 : i32
    return %arg0, %c0_i32 : i32, i32
  }
  func.func @transform_1(%arg0: i32) -> (i32, i32) {
    %c0_i32 = arith.constant 0 : i32
    %c0_i32_0 = arith.constant 0 : i32
    %c0_i32_1 = arith.constant 0 : i32
    return %c0_i32, %c0_i32_0 : i32, i32
  }
  func.func @transform_2(%arg0: i32) -> (i32, i32) {
    %c0_i32 = arith.constant 0 : i32
    %c0_i32_0 = arith.constant 0 : i32
    %c0_i32_1 = arith.constant 0 : i32
    return %c0_i32, %c0_i32_0 : i32, i32
  }
  func.func @transform_3(%arg0: i32) -> (i32, i32) {
    %c0_i32 = arith.constant 0 : i32
    %c0_i32_0 = arith.constant 0 : i32
    %c0_i32_1 = arith.constant 0 : i32
    return %c0_i32, %c0_i32_0 : i32, i32
  }
  func.func @transform_4(%arg0: i32) -> (i32, i32) {
    %c0_i32 = arith.constant 0 : i32
    %c0_i32_0 = arith.constant 0 : i32
    %c0_i32_1 = arith.constant 0 : i32
    return %c0_i32, %c0_i32_0 : i32, i32
  }
  func.func @transform_5(%arg0: i32) -> (i32, i32) {
    %c0_i32 = arith.constant 0 : i32
    %c0_i32_0 = arith.constant 0 : i32
    return %arg0, %c0_i32 : i32, i32
  }
}

</mosaic_0001>

<llo_original>
// kernel: tpu_custom_call.1
$region0: #{tpu_custom_call.1}
  #allocation0 [shape = 'u32[]', space=smem, size = 0x4, offset = 0x4, fixed_abs, tag = 'smem constant byte address 0x4 - core index']
  #allocation1 [shape = 'u32[144,128]{1,0:T(1,128)}', space=vmem, size = 0x12000, scoped, tag = 'internal scratch']
  %s0 = inlined_call_operand.vmem [shape: f32[8,32], index: 0, kind: input, shape index: {}]
  %s1 = inlined_call_operand.vmem [shape: f32[32,8], index: 1, kind: input, shape index: {}]
  %s2 = inlined_call_operand.vmem [shape: f32[1,8], index: 2, kind: input, shape index: {}]
  %s3 = inlined_call_operand.vmem [shape: f32[8,16], index: 3, kind: input, shape index: {}]
  %s4 = inlined_call_operand.vmem [shape: f32[1,16], index: 4, kind: input, shape index: {}]
  %s5 = inlined_call_operand.hbm [shape: f32[8,16], index: 5, kind: output, shape index: {}]
  %s6 = sld [smem:[#allocation0]]
  $region30: #{tpu_custom_call.1} parent=0
    _
  %s8 = ssub.s32 1, %s6
  %s9 = scalar_select 0, %s8, %s6
  $region1: #{tpu_custom_call.1} parent=0
    #allocation2 [shape = 'u8[4096]{0}', space=vmem, size = 0x1000, scoped, tag = 'output window, operand 0, single buffered']
    #allocation3 [shape = 's32[1]{0}', space=sflag, size = 0x4, scoped, tag = 'scoped memory for tpu_custom_call.1']
    %10 = vsyncpa [#allocation3], 0
    // Predicated region
    $region2: #{tpu_custom_call.1} parent=1 // pred_check
      _
    $region3: #{tpu_custom_call.1} parent=1 // pred_check_branch
      %12 = sbr.rel (0) target = $region5
    $region4: #{tpu_custom_call.1} parent=1 // pred_region
      _
    $region5: #{tpu_custom_call.1} parent=1 // pred_fallthru
      _
    // Predicated region
    $region6: #{tpu_custom_call.1} parent=1 // pred_check
      _
    $region7: #{tpu_custom_call.1} parent=1 // pred_check_branch
      %14 = sbr.rel (0) target = $region9
    $region8: #{tpu_custom_call.1} parent=1 // pred_region
      _
    $region9: #{tpu_custom_call.1} parent=1 // pred_fallthru
      _
    // Predicated region
    $region10: #{tpu_custom_call.1} parent=1 // pred_check
      _
    $region11: #{tpu_custom_call.1} parent=1 // pred_check_branch
      %16 = sbr.rel (0) target = $region13
    $region12: #{tpu_custom_call.1} parent=1 // pred_region
      _
    $region13: #{tpu_custom_call.1} parent=1 // pred_fallthru
      _
    // Predicated region
    $region14: #{tpu_custom_call.1} parent=1 // pred_check
      _
    $region15: #{tpu_custom_call.1} parent=1 // pred_check_branch
      %18 = sbr.rel (0) target = $region17
    $region16: #{tpu_custom_call.1} parent=1 // pred_region
      _
    $region17: #{tpu_custom_call.1} parent=1 // pred_fallthru
      _
    // Predicated region
    $region18: #{tpu_custom_call.1} parent=1 // pred_check
      _
    $region19: #{tpu_custom_call.1} parent=1 // pred_check_branch
      %20 = sbr.rel (0) target = $region21
    $region20: #{tpu_custom_call.1} parent=1 // pred_region
      _
    $region21: #{tpu_custom_call.1} parent=1 // pred_fallthru
      _
    %v21 = vld [vmem:[%s0] sm:$0xff]
    %v22 = vld [vmem:[%s1] sm:$0xff]
    %v23 = vld [vmem:[%s1 + $0x8] sm:$0xff]
    %v24 = vld [vmem:[%s1 + $0x10] sm:$0xff]
    %v25 = vld [vmem:[%s1 + $0x18] sm:$0xff]
    %v26 = vld [vmem:[%s2] sm:$0x1]
    %v28 = vlaneseq
    %v29 = vshrl.u32 %v28, 7
    %v30 = vsub.s32 0, %v29
    %v31 = vrot.slane %v26, %v30
    %vm33 = vcmask 261120
    %v35 = vsel %vm33, %v21, 0
    %37 = vmatprep.subr.mxu0 0.0
    %38 = vmatpush1.msra.mxu0 0.0
    %39 = vmatprep.subr.mxu0 0.0
    %40 = vmatpush1.msra.mxu0 0.0
    %41 = vmatprep.subr.mxu0 0.0
    %42 = vmatpush1.msra.mxu0 0.0
    %43 = vmatprep.subr.mxu0 0.0
    %44 = vmatpush1.msra.mxu0 0.0
    %45 = vmatprep.subr.mxu0 0.0
    %46 = vmatpush1.msra.mxu0 0.0
    %47 = vmatprep.subr.mxu0 0.0
    %48 = vmatpush1.msra.mxu0 0.0
    %49 = vmatprep.subr.mxu0 0.0
    %50 = vmatpush1.msra.mxu0 0.0
    %51 = vmatprep.subr.mxu0 0.0
    %52 = vmatpush1.msra.mxu0 0.0
    %53 = vmatprep.subr.mxu0 0.0
    %54 = vmatpush1.msra.mxu0 0.0
    %55 = vmatprep.subr.mxu0 0.0
    %56 = vmatpush1.msra.mxu0 0.0
    %57 = vmatprep.subr.mxu0 0.0
    %58 = vmatpush1.msra.mxu0 0.0
    %59 = vmatprep.subr.mxu0 0.0
    %60 = vmatpush1.msra.mxu0 0.0
    %61 = vmatprep.subr.mxu0 0.0
    %62 = vmatpush1.msra.mxu0 %v25
    %63 = vmatprep.subr.mxu0 0.0
    %64 = vmatpush1.msra.mxu0 %v24
    %65 = vmatprep.subr.mxu0 0.0
    %66 = vmatpush1.msra.mxu0 %v23
    %67 = vmatprep.subr.mxu0 0.0
    %68 = vmatpush1.msra.mxu0 %v22
    %69 = vmatprep.subr.mxu0 0.0
    %70 = vmatpush2.msra.mxu0 0.0
    %71 = vmatprep.subr.mxu0 0.0
    %72 = vmatpush2.msra.mxu0 0.0
    %73 = vmatprep.subr.mxu0 0.0
    %74 = vmatpush2.msra.mxu0 0.0
    %75 = vmatprep.subr.mxu0 0.0
    %76 = vmatpush2.msra.mxu0 0.0
    %77 = vmatprep.subr.mxu0 0.0
    %78 = vmatpush2.msra.mxu0 0.0
    %79 = vmatprep.subr.mxu0 0.0
    %80 = vmatpush2.msra.mxu0 0.0
    %81 = vmatprep.subr.mxu0 0.0
    %82 = vmatpush2.msra.mxu0 0.0
    %83 = vmatprep.subr.mxu0 0.0
    %84 = vmatpush2.msra.mxu0 0.0
    %85 = vmatprep.subr.mxu0 0.0
    %86 = vmatpush2.msra.mxu0 0.0
    %87 = vmatprep.subr.mxu0 0.0
    %88 = vmatpush2.msra.mxu0 0.0
    %89 = vmatprep.subr.mxu0 0.0
    %90 = vmatpush2.msra.mxu0 0.0
    %91 = vmatprep.subr.mxu0 0.0
    %92 = vmatpush2.msra.mxu0 0.0
    %93 = vmatprep.subr.mxu0 0.0
    %94 = vmatpush2.msra.mxu0 0.0
    %95 = vmatprep.subr.mxu0 0.0
    %96 = vmatpush2.msra.mxu0 0.0
    %97 = vmatprep.subr.mxu0 0.0
    %98 = vmatpush2.msra.mxu0 0.0
    %99 = vmatprep.subr.mxu0 0.0
    %100 = vmatpush2.msra.mxu0 0.0
    %101 = vmatprep.mubr.f32.mxu0 0.0
    %102 = vmatmul.mubr.f32.gmra.mxu0 %v35
    %v103 = vpop.f32.mrf.mxu0
    %v104 = vadd.f32 %v31, %v103
    %v105 = vpop.f32.mrf.mxu0
    %106 = vdwg.mxu0
    %v107 = vmax.f32 %v104, 0.0
    %v108 = vld [vmem:[%s3] sm:$0xff]
    %v109 = vld [vmem:[%s4] sm:$0x1]
    %v111 = vlaneseq
    %v112 = vshrl.u32 %v111, 7
    %v113 = vsub.s32 0, %v112
    %v114 = vrot.slane %v109, %v113
    %vm116 = vcmask 64512
    %v118 = vsel %vm116, %v107, 0
    %120 = vmatprep.subr.mxu0 0.0
    %121 = vmatpush1.msra.mxu0 0.0
    %122 = vmatprep.subr.mxu0 0.0
    %123 = vmatpush1.msra.mxu0 0.0
    %124 = vmatprep.subr.mxu0 0.0
    %125 = vmatpush1.msra.mxu0 0.0
    %126 = vmatprep.subr.mxu0 0.0
    %127 = vmatpush1.msra.mxu0 0.0
    %128 = vmatprep.subr.mxu0 0.0
    %129 = vmatpush1.msra.mxu0 0.0
    %130 = vmatprep.subr.mxu0 0.0
    %131 = vmatpush1.msra.mxu0 0.0
    %132 = vmatprep.subr.mxu0 0.0
    %133 = vmatpush1.msra.mxu0 0.0
    %134 = vmatprep.subr.mxu0 0.0
    %135 = vmatpush1.msra.mxu0 0.0
    %136 = vmatprep.subr.mxu0 0.0
    %137 = vmatpush1.msra.mxu0 0.0
    %138 = vmatprep.subr.mxu0 0.0
    %139 = vmatpush1.msra.mxu0 0.0
    %140 = vmatprep.subr.mxu0 0.0
    %141 = vmatpush1.msra.mxu0 0.0
    %142 = vmatprep.subr.mxu0 0.0
    %143 = vmatpush1.msra.mxu0 0.0
    %144 = vmatprep.subr.mxu0 0.0
    %145 = vmatpush1.msra.mxu0 0.0
    %146 = vmatprep.subr.mxu0 0.0
    %147 = vmatpush1.msra.mxu0 0.0
    %148 = vmatprep.subr.mxu0 0.0
    %149 = vmatpush1.msra.mxu0 0.0
    %150 = vmatprep.subr.mxu0 0.0
    %151 = vmatpush1.msra.mxu0 %v108
    %152 = vmatprep.subr.mxu0 0.0
    %153 = vmatpush2.msra.mxu0 0.0
    %154 = vmatprep.subr.mxu0 0.0
    %155 = vmatpush2.msra.mxu0 0.0
    %156 = vmatprep.subr.mxu0 0.0
    %157 = vmatpush2.msra.mxu0 0.0
    %158 = vmatprep.subr.mxu0 0.0
    %159 = vmatpush2.msra.mxu0 0.0
    %160 = vmatprep.subr.mxu0 0.0
    %161 = vmatpush2.msra.mxu0 0.0
    %162 = vmatprep.subr.mxu0 0.0
    %163 = vmatpush2.msra.mxu0 0.0
    %164 = vmatprep.subr.mxu0 0.0
    %165 = vmatpush2.msra.mxu0 0.0
    %166 = vmatprep.subr.mxu0 0.0
    %167 = vmatpush2.msra.mxu0 0.0
    %168 = vmatprep.subr.mxu0 0.0
    %169 = vmatpush2.msra.mxu0 0.0
    %170 = vmatprep.subr.mxu0 0.0
    %171 = vmatpush2.msra.mxu0 0.0
    %172 = vmatprep.subr.mxu0 0.0
    %173 = vmatpush2.msra.mxu0 0.0
    %174 = vmatprep.subr.mxu0 0.0
    %175 = vmatpush2.msra.mxu0 0.0
    %176 = vmatprep.subr.mxu0 0.0
    %177 = vmatpush2.msra.mxu0 0.0
    %178 = vmatprep.subr.mxu0 0.0
    %179 = vmatpush2.msra.mxu0 0.0
    %180 = vmatprep.subr.mxu0 0.0
    %181 = vmatpush2.msra.mxu0 0.0
    %182 = vmatprep.subr.mxu0 0.0
    %183 = vmatpush2.msra.mxu0 0.0
    %184 = vmatprep.mubr.f32.mxu0 0.0
    %185 = vmatmul.mubr.f32.gmra.mxu0 %v118
    %v186 = vpop.f32.mrf.mxu0
    %v187 = vadd.f32 %v114, %v186
    %v188 = vpop.f32.mrf.mxu0
    %189 = vdwg.mxu0
    %vm190 = vcmask 130048
    %191 = vst.msk [vmem:[#allocation2] sm:$0xff] %vm190, %v187
    // Predicated region
    $region22: #{tpu_custom_call.1} parent=1 // pred_check
      _
    $region23: #{tpu_custom_call.1} parent=1 // pred_check_branch
      %193 = sbr.rel (0) target = $region25
    $region24: #{tpu_custom_call.1} parent=1 // pred_region
      %s195 = ssub.s32 128, 128
      %196 = vsyncadd [#allocation3], %s195
      %s198 = sshll.u32 [#allocation2], 4
      %s199 = int_to_ptr.vmem [resolvable:$true] %s198
      %201 = dma.vmem_to_hbm [thread:$0]  %s199, 128, %s5, [#allocation3]
    $region25: #{tpu_custom_call.1} parent=1 // pred_fallthru
      _
    // Predicated region
    $region26: #{tpu_custom_call.1} parent=1 // pred_check
      _
    $region27: #{tpu_custom_call.1} parent=1 // pred_check_branch
      %203 = sbr.rel (0) target = $region29
    $region28: #{tpu_custom_call.1} parent=1 // pred_region
      %204 = dma.done [#allocation3], 128
    $region29: #{tpu_custom_call.1} parent=1 // pred_fallthru
      _
    %205 = vsyncpa [#allocation3], 1

</llo_original>
